<compile_context>
chip_gen: v7x
topology: tpu7x:2x2x1
jax: 0.10.0
libtpu: 0.0.40
codegen_flags: <defaults>
</compile_context>

<pallas_src>
import functools

import jax
import jax.numpy as jnp
from jax.experimental import pallas as pl
from jax.experimental.pallas import tpu as pltpu


def _cdiv(a, b):
    return -(-a // b)


def _round_up(a, m):
    return _cdiv(a, m) * m


def _frozen_bn_kernel(x_ref, scale_ref, shift_ref, o_ref, *, fuse_relu):
    # Elementwise FMA on the VPU; (TR, 1) params broadcast over the lane axis.
    x = x_ref[...].astype(jnp.float32)
    y = x * scale_ref[...] + shift_ref[...]
    if fuse_relu:
        y = jnp.maximum(y, 0.0)
    o_ref[...] = y.astype(o_ref.dtype)


def frozen_batch_norm_2d(x, weight, bias, running_mean, running_var, eps=1e-5,
                         *, fuse_relu=False, donate_input=False,
                         target_tile_bytes=4 * 1024 * 1024,
                         min_tile_bytes=1 * 1024 * 1024,
                         row_bytes_cap=32 * 1024):
    """x: (N, C, H, W).  weight/bias/running_*: (C,).  Matches PyTorch forward
    (plus optional fused ReLU)."""
    N, C, H, W = x.shape
    rows, cols = N * C, H * W
    itemsize = x.dtype.itemsize
    # Sublane packing: f32 -> 8, bf16/f16 -> 16, int8/fp8 -> 32 rows per vreg.
    sub = 8 if itemsize >= 4 else (16 if itemsize == 2 else 32)

    # Fold frozen statistics into a single per-channel scale/shift (f32).
    scale_c = weight.astype(jnp.float32) * jax.lax.rsqrt(
        running_var.astype(jnp.float32) + jnp.float32(eps))
    shift_c = bias.astype(jnp.float32) - running_mean.astype(jnp.float32) * scale_c

    # One value per (n, c) row of the (N*C, H*W) slab.
    scale_r = jnp.tile(scale_c.reshape(1, C), (N, 1)).reshape(rows, 1)
    shift_r = jnp.tile(shift_c.reshape(1, C), (N, 1)).reshape(rows, 1)

    x2 = x.reshape(rows, cols)

    # ---- column tile ------------------------------------------------------
    if cols * itemsize <= row_bytes_cap:
        TC = cols                           # whole contiguous HBM rows per DMA
    else:
        TC = row_bytes_cap // itemsize      # 32 KiB per block-row; mult of 128

    # ---- row tile ---------------------------------------------------------
    row_bytes = TC * itemsize
    TR = max(sub, (target_tile_bytes // row_bytes) // sub * sub)
    if rows > sub:
        tr_par = _round_up(_cdiv(rows, 8), sub)                 # >=8 blocks for v7x megacore
        tr_min = max(sub, _round_up(_cdiv(min_tile_bytes, row_bytes), sub))
        TR = min(TR, max(tr_par, tr_min))                       # but keep blocks >= ~1 MiB
    if TR >= rows:
        TR = rows                           # full extent: always a legal block shape
    else:
        TR = max(sub, (TR // sub) * sub)    # otherwise keep the sublane multiple

    # ---- grid / specs (ragged last blocks are masked by Pallas) -----------
    if TC == cols:
        grid = (_cdiv(rows, TR),)
        in_specs = [
            pl.BlockSpec((TR, TC), lambda i: (i, 0)),
            pl.BlockSpec((TR, 1), lambda i: (i, 0)),
            pl.BlockSpec((TR, 1), lambda i: (i, 0)),
        ]
        out_spec = pl.BlockSpec((TR, TC), lambda i: (i, 0))
        sem = ("parallel",)
    else:
        grid = (_cdiv(rows, TR), _cdiv(cols, TC))
        in_specs = [
            pl.BlockSpec((TR, TC), lambda i, j: (i, j)),
            pl.BlockSpec((TR, 1), lambda i, j: (i, 0)),
            pl.BlockSpec((TR, 1), lambda i, j: (i, 0)),
        ]
        out_spec = pl.BlockSpec((TR, TC), lambda i, j: (i, j))
        sem = ("parallel", "parallel")

    # Double-buffered x + out tiles plus (TR, 1) f32 params, with headroom.
    # Capped at 48 MiB so it is safe on v7x (64 MiB physical VMEM).
    buf_bytes = 2 * (2 * TR * TC * itemsize + 2 * TR * 4)
    vmem_limit = int(min(48 * 1024 * 1024,
                         max(32 * 1024 * 1024, buf_bytes + 4 * 1024 * 1024)))

    kwargs = {}
    if donate_input:
        # Reuse x's HBM buffer when the activation is dead after BN.
        kwargs["input_output_aliases"] = {0: 0}

    out2 = pl.pallas_call(
        functools.partial(_frozen_bn_kernel, fuse_relu=fuse_relu),
        out_shape=jax.ShapeDtypeStruct((rows, cols), x.dtype),
        grid=grid,
        in_specs=in_specs,
        out_specs=out_spec,
        compiler_params=pltpu.CompilerParams(
            dimension_semantics=sem,
            vmem_limit_bytes=vmem_limit,
        ),
        **kwargs,
    )(x2, scale_r, shift_r)

    return out2.reshape(N, C, H, W)


if __name__ == "__main__":
    key = jax.random.PRNGKey(0)
    kx, kw, kb, km, kv, kx2 = jax.random.split(key, 6)

    def ref_fn(x, weight, bias, running_mean, running_var, eps, relu=False):
        C = x.shape[1]
        w4 = weight.reshape(1, C, 1, 1).astype(jnp.float32)
        b4 = bias.reshape(1, C, 1, 1).astype(jnp.float32)
        rv4 = running_var.reshape(1, C, 1, 1).astype(jnp.float32)
        rm4 = running_mean.reshape(1, C, 1, 1).astype(jnp.float32)
        scale = w4 * jax.lax.rsqrt(rv4 + eps)
        shift = b4 - rm4 * scale
        y = x.astype(jnp.float32) * scale + shift
        if relu:
            y = jnp.maximum(y, 0.0)
        return y.astype(x.dtype)

    eps = 1e-5

    # Case 1: aligned spatial extent (matches the module's typical use).
    N, C, H, W = 2, 4, 16, 16
    x = jax.random.normal(kx, (N, C, H, W), dtype=jnp.float32)
    weight = jnp.ones((C,), jnp.float32) + 0.1 * jax.random.normal(kw, (C,))
    bias = 0.1 * jax.random.normal(kb, (C,))
    running_mean = 0.1 * jax.random.normal(km, (C,))
    running_var = jnp.ones((C,), jnp.float32) + 0.05 * jax.random.uniform(kv, (C,))

    out = jax.block_until_ready(
        frozen_batch_norm_2d(x, weight, bias, running_mean, running_var, eps))
    ref = ref_fn(x, weight, bias, running_mean, running_var, eps)
    assert out.shape == (N, C, H, W)
    assert jnp.allclose(out, ref, atol=1e-5, rtol=1e-5)

    # Case 2: ragged shapes (rows % 8 != 0, cols % 128 != 0) exercise the
    # no-pad / masked-last-block path, plus the fused-ReLU variant.
    N2, C2, H2, W2 = 3, 5, 7, 7
    x_r = jax.random.normal(kx2, (N2, C2, H2, W2), dtype=jnp.float32)
    w_r = jnp.ones((C2,), jnp.float32)
    b_r = jnp.zeros((C2,), jnp.float32) + 0.05
    rm_r = jnp.zeros((C2,), jnp.float32) + 0.02
    rv_r = jnp.ones((C2,), jnp.float32) * 0.9
    out_r = jax.block_until_ready(
        frozen_batch_norm_2d(x_r, w_r, b_r, rm_r, rv_r, eps, fuse_relu=True))
    ref_r = ref_fn(x_r, w_r, b_r, rm_r, rv_r, eps, relu=True)
    assert out_r.shape == (N2, C2, H2, W2)
    assert jnp.allclose(out_r, ref_r, atol=1e-5, rtol=1e-5)

    print("KERNEL_OK")
</pallas_src>

<mosaic_0001>
module attributes {stable_mosaic.version = 11 : i64} {
  func.func @_frozen_bn_kernel(%arg0: i32, %arg1: memref<8x256xf32, #tpu.memory_space<vmem>>, %arg2: memref<8x1xf32, #tpu.memory_space<vmem>>, %arg3: memref<8x1xf32, #tpu.memory_space<vmem>>, %arg4: memref<8x256xf32, #tpu.memory_space<vmem>>) attributes {dimension_semantics = [#tpu.dimension_semantics<parallel>], iteration_bounds = array<i64: 1>, scalar_prefetch = 0 : i64, scratch_operands = 0 : i64, tpu.core_type = #tpu.core_type<tc>, window_params = [{transform_indices = @transform_0, window_bounds = array<i64: 8, 256>}, {transform_indices = @transform_1, window_bounds = array<i64: 8, 1>}, {transform_indices = @transform_2, window_bounds = array<i64: 8, 1>}, {transform_indices = @transform_3, window_bounds = array<i64: 8, 256>}]} {
    %c0 = arith.constant 0 : index
    %c0_0 = arith.constant 0 : index
    %0 = vector.load %arg1[%c0, %c0_0] : memref<8x256xf32, #tpu.memory_space<vmem>>, vector<8x256xf32>
    %c0_1 = arith.constant 0 : index
    %c0_2 = arith.constant 0 : index
    %1 = vector.load %arg2[%c0_1, %c0_2] : memref<8x1xf32, #tpu.memory_space<vmem>>, vector<8x1xf32>
    %2 = vector.broadcast %1 : vector<8x1xf32> to vector<8x256xf32>
    %3 = arith.mulf %0, %2 : vector<8x256xf32>
    %c0_3 = arith.constant 0 : index
    %c0_4 = arith.constant 0 : index
    %4 = vector.load %arg3[%c0_3, %c0_4] : memref<8x1xf32, #tpu.memory_space<vmem>>, vector<8x1xf32>
    %5 = vector.broadcast %4 : vector<8x1xf32> to vector<8x256xf32>
    %6 = arith.addf %3, %5 : vector<8x256xf32>
    %c0_5 = arith.constant 0 : index
    %c0_6 = arith.constant 0 : index
    %7 = vector.load %arg4[%c0_5, %c0_6] : memref<8x256xf32, #tpu.memory_space<vmem>>, vector<8x256xf32>
    tpu.vector_store %arg4[%c0_5, %c0_6], %6 {strides = array<i32>} : memref<8x256xf32, #tpu.memory_space<vmem>>, vector<8x256xf32>,
    return
  }
  func.func @transform_0(%arg0: i32) -> (i32, i32) {
    %c0_i32 = arith.constant 0 : i32
    %c0_i32_0 = arith.constant 0 : i32
    return %arg0, %c0_i32 : i32, i32
  }
  func.func @transform_1(%arg0: i32) -> (i32, i32) {
    %c0_i32 = arith.constant 0 : i32
    %c0_i32_0 = arith.constant 0 : i32
    return %arg0, %c0_i32 : i32, i32
  }
  func.func @transform_2(%arg0: i32) -> (i32, i32) {
    %c0_i32 = arith.constant 0 : i32
    %c0_i32_0 = arith.constant 0 : i32
    return %arg0, %c0_i32 : i32, i32
  }
  func.func @transform_3(%arg0: i32) -> (i32, i32) {
    %c0_i32 = arith.constant 0 : i32
    %c0_i32_0 = arith.constant 0 : i32
    return %arg0, %c0_i32 : i32, i32
  }
}

</mosaic_0001>

<llo_original>
// kernel: tpu_custom_call.1
$region0: #{tpu_custom_call.1}
  #allocation0 [shape = 'u32[]', space=smem, size = 0x4, offset = 0x4, fixed_abs, tag = 'smem constant byte address 0x4 - core index']
  #allocation1 [shape = 'u32[144,128]{1,0:T(1,128)}', space=vmem, size = 0x12000, scoped, tag = 'internal scratch']
  %s0 = inlined_call_operand.vmem [shape: f32[8,256], index: 0, kind: input, shape index: {}]
  %s1 = inlined_call_operand.vmem [shape: f32[8,1], index: 1, kind: input, shape index: {}]
  %s2 = inlined_call_operand.vmem [shape: f32[8,1], index: 2, kind: input, shape index: {}]
  %s3 = inlined_call_operand.hbm [shape: f32[8,256], index: 3, kind: output, shape index: {}]
  %s4 = sld [smem:[#allocation0]]
  $region22: #{tpu_custom_call.1} parent=0
    _
  %s6 = ssub.s32 1, %s4
  %s7 = scalar_select 0, %s6, %s4
  $region1: #{tpu_custom_call.1} parent=0
    #allocation2 [shape = 'u8[8192]{0}', space=vmem, size = 0x2000, scoped, tag = 'output window, operand 0, single buffered']
    #allocation3 [shape = 's32[1]{0}', space=sflag, size = 0x4, scoped, tag = 'scoped memory for tpu_custom_call.1']
    %8 = vsyncpa [#allocation3], 0
    // Predicated region
    $region2: #{tpu_custom_call.1} parent=1 // pred_check
      _
    $region3: #{tpu_custom_call.1} parent=1 // pred_check_branch
      %10 = sbr.rel (0) target = $region5
    $region4: #{tpu_custom_call.1} parent=1 // pred_region
      _
    $region5: #{tpu_custom_call.1} parent=1 // pred_fallthru
      _
    // Predicated region
    $region6: #{tpu_custom_call.1} parent=1 // pred_check
      _
    $region7: #{tpu_custom_call.1} parent=1 // pred_check_branch
      %12 = sbr.rel (0) target = $region9
    $region8: #{tpu_custom_call.1} parent=1 // pred_region
      _
    $region9: #{tpu_custom_call.1} parent=1 // pred_fallthru
      _
    // Predicated region
    $region10: #{tpu_custom_call.1} parent=1 // pred_check
      _
    $region11: #{tpu_custom_call.1} parent=1 // pred_check_branch
      %14 = sbr.rel (0) target = $region13
    $region12: #{tpu_custom_call.1} parent=1 // pred_region
      _
    $region13: #{tpu_custom_call.1} parent=1 // pred_fallthru
      _
    %v15 = vld [vmem:[%s0] sm:$0xff]
    %v16 = vld [vmem:[%s0 + $0x8] sm:$0xff]
    %v17 = vld [vmem:[%s1] sm:$0xff]
    %19 = vset.pattern.permute.xlu0 0
    %20 = vperm.xlu0 %19, %v17
    %v21 = vpop.permute.xlu0 %20
    %v23 = vmul.f32 %v15, %v21
    %v24 = vmul.f32 %v16, %v21
    %v25 = vld [vmem:[%s2] sm:$0xff]
    %27 = vset.pattern.permute.xlu0 0
    %28 = vperm.xlu0 %27, %v25
    %v29 = vpop.permute.xlu0 %28
    %v31 = vadd.f32 %v23, %v29
    %v32 = vadd.f32 %v24, %v29
    %33 = vst [vmem:[#allocation2] sm:$0xff] %v31
    %34 = vst [vmem:[#allocation2 + $0x8] sm:$0xff] %v32
    // Predicated region
    $region14: #{tpu_custom_call.1} parent=1 // pred_check
      _
    $region15: #{tpu_custom_call.1} parent=1 // pred_check_branch
      %36 = sbr.rel (0) target = $region17
    $region16: #{tpu_custom_call.1} parent=1 // pred_region
      %s38 = ssub.s32 256, 256
      %39 = vsyncadd [#allocation3], %s38
      %s41 = sshll.u32 [#allocation2], 4
      %s42 = int_to_ptr.vmem [resolvable:$true] %s41
      %44 = dma.vmem_to_hbm [thread:$0]  %s42, 256, %s3, [#allocation3]
    $region17: #{tpu_custom_call.1} parent=1 // pred_fallthru
      _
    // Predicated region
    $region18: #{tpu_custom_call.1} parent=1 // pred_check
      _
    $region19: #{tpu_custom_call.1} parent=1 // pred_check_branch
      %46 = sbr.rel (0) target = $region21
    $region20: #{tpu_custom_call.1} parent=1 // pred_region
      %47 = dma.done [#allocation3], 256
    $region21: #{tpu_custom_call.1} parent=1 // pred_fallthru
      _
    %48 = vsyncpa [#allocation3], 1

</llo_original>
